<compile_context>
chip_gen: v7x
topology: tpu7x:2x2x1
jax: 0.10.0
libtpu: 0.0.40
codegen_flags: <defaults>
</compile_context>

<pallas_src>
import math

import jax
import jax.numpy as jnp
from jax.experimental import pallas as pl
from jax.experimental.pallas import tpu as pltpu

# Model dimensions (fixed by the PyTorch module).
B = 2                   # batch
C, H, W = 1, 224, 224   # flatten(1) must yield 224*224 = Linear in_features
K = C * H * W           # 50176
N = 2                   # Linear out_features

LANE = 128
KT = K // LANE          # 392  (392 % 8 == 0 -> sublane-dense, no padding)


def linear_sigmoid_kernel(x_ref, w_ref, b_ref, o_ref):
    # x_ref : (B, KT, 128) f32 VMEM  -- activations, sublane/lane dense
    # w_ref : (N, KT, 128) f32 VMEM  -- weight in native PyTorch (N, K) layout
    # b_ref : (1, N)       f32 SMEM  -- bias scalars
    # o_ref : (B, N)       f32 VMEM
    b_dim, n_dim = o_ref.shape

    row = jax.lax.broadcasted_iota(jnp.int32, (b_dim, n_dim), 0)
    col = jax.lax.broadcasted_iota(jnp.int32, (b_dim, n_dim), 1)

    # VPU multiply-reduce, fully unrolled over the 2x2 output.
    # Each (b, n) pair: 49 fully-packed vregs of vmul + one XLU reduce,
    # accumulated exactly in f32 (no MXU bf16 passes, no weight relayout).
    y = jnp.zeros((b_dim, n_dim), jnp.float32)
    for b in range(b_dim):
        xb = x_ref[b, :, :]                       # (KT, 128)
        for n in range(n_dim):
            s = jnp.sum(xb * w_ref[n, :, :])      # scalar, exact f32
            y = jnp.where((row == b) & (col == n), s, y)

    # Bias row rebuilt from SMEM scalars (avoids an (8,128)-padded VMEM tile
    # for 8 bytes of data).
    bias = jnp.full((b_dim, n_dim), b_ref[0, 0], dtype=jnp.float32)
    for n in range(1, n_dim):
        bias = jnp.where(col == n, b_ref[0, n], bias)

    o_ref[...] = jax.nn.sigmoid(y + bias).astype(o_ref.dtype)


def model_forward(x_nchw, weight, bias):
    """x_nchw: (B, C, H, W) f32; weight: (N, K) f32 (PyTorch layout); bias: (N,) f32."""
    b = x_nchw.shape[0]
    # flatten(1) followed by a free, contiguous reshape to a dense
    # (sublane, lane) = (KT, 128) layout.  No transpose anywhere.
    x3d = x_nchw.reshape(b, KT, LANE)
    w3d = weight.reshape(N, KT, LANE)
    b2d = bias.reshape(1, N)

    cost = pl.CostEstimate(
        flops=2 * b * K * N,
        transcendentals=b * N,
        bytes_accessed=(b * K + N * K + N + b * N) * 4,
    )

    return pl.pallas_call(
        linear_sigmoid_kernel,
        out_shape=jax.ShapeDtypeStruct((b, N), jnp.float32),
        in_specs=[
            pl.BlockSpec((b, KT, LANE), lambda: (0, 0, 0)),        # activations (VMEM, dense)
            pl.BlockSpec((N, KT, LANE), lambda: (0, 0, 0)),        # weight (VMEM, dense)
            pl.BlockSpec(memory_space=pltpu.MemorySpace.SMEM),     # bias scalars (SMEM)
        ],
        out_specs=pl.BlockSpec((b, N), lambda: (0, 0)),
        cost_estimate=cost,
    )(x3d, w3d, b2d)


if __name__ == "__main__":
    key = jax.random.PRNGKey(0)
    kx, kw, kb = jax.random.split(key, 3)

    # Deterministic parameter init (PyTorch Linear default: U(-1/sqrt(K), 1/sqrt(K))).
    bound = 1.0 / math.sqrt(K)
    weight = jax.random.uniform(kw, (N, K), jnp.float32, minval=-bound, maxval=bound)
    bias = jax.random.uniform(kb, (N,), jnp.float32, minval=-bound, maxval=bound)

    # Example input consistent with the Linear's in_features (spatial size is
    # fixed at 224x224 by the module itself).
    x1 = jax.random.normal(kx, (B, C, H, W), jnp.float32)

    out = jax.block_until_ready(model_forward(x1, weight, bias))

    # Plain-JAX reference with exact f32 elementwise multiply-reduce (avoids
    # MXU default-precision ambiguity in the reference itself).
    x2d = x1.reshape(B, -1)
    ref_logits = jnp.sum(x2d[:, None, :] * weight[None, :, :], axis=-1) + bias
    ref = jax.nn.sigmoid(ref_logits)

    assert out.shape == (B, N)
    # Both sides are f32 accumulations; tolerance covers reduction-order diffs.
    assert jnp.allclose(out, ref, atol=5e-5, rtol=5e-5)

    print("KERNEL_OK")
</pallas_src>

<mosaic_0001>
module attributes {stable_mosaic.version = 11 : i64} {
  func.func @linear_sigmoid_kernel(%arg0: memref<2x392x128xf32, #tpu.memory_space<vmem>>, %arg1: memref<2x392x128xf32, #tpu.memory_space<vmem>>, %arg2: memref<1x2xf32, #tpu.memory_space<smem>>, %arg3: memref<2x2xf32, #tpu.memory_space<vmem>>) attributes {dimension_semantics = [], scalar_prefetch = 0 : i64, scratch_operands = 0 : i64, tpu.core_type = #tpu.core_type<tc>} {
    %0 = tpu.iota {dimensions = array<i32: 0>} : vector<2x2xi32>
    %1 = tpu.iota {dimensions = array<i32: 1>} : vector<2x2xi32>
    %cst = arith.constant 0.000000e+00 : f32
    %2 = vector.broadcast %cst : f32 to vector<2x2xf32>
    %c0 = arith.constant 0 : index
    %c0_0 = arith.constant 0 : index
    %c0_1 = arith.constant 0 : index
    %3 = vector.load %arg0[%c0, %c0_0, %c0_1] : memref<2x392x128xf32, #tpu.memory_space<vmem>>, vector<1x392x128xf32>
    %4 = vector.shape_cast %3 : vector<1x392x128xf32> to vector<392x128xf32>
    %c0_2 = arith.constant 0 : index
    %c0_3 = arith.constant 0 : index
    %c0_4 = arith.constant 0 : index
    %5 = vector.load %arg1[%c0_2, %c0_3, %c0_4] : memref<2x392x128xf32, #tpu.memory_space<vmem>>, vector<1x392x128xf32>
    %6 = vector.shape_cast %5 : vector<1x392x128xf32> to vector<392x128xf32>
    %7 = arith.mulf %4, %6 : vector<392x128xf32>
    %8 = vector.shape_cast %7 : vector<392x128xf32> to vector<1x392x128xf32>
    %cst_5 = arith.constant dense<0.000000e+00> : vector<1xf32>
    %9 = vector.multi_reduction <add>, %8, %cst_5 [1, 2] : vector<1x392x128xf32> to vector<1xf32>
    %10 = vector.shape_cast %9 : vector<1xf32> to vector<1x1x1xf32>
    %11 = vector.extract %10[0, 0, 0] : f32 from vector<1x1x1xf32>
    %c0_i32 = arith.constant 0 : i32
    %12 = vector.broadcast %c0_i32 : i32 to vector<2x2xi32>
    %13 = arith.cmpi eq, %0, %12 : vector<2x2xi32>
    %c0_i32_6 = arith.constant 0 : i32
    %14 = vector.broadcast %c0_i32_6 : i32 to vector<2x2xi32>
    %15 = arith.cmpi eq, %1, %14 : vector<2x2xi32>
    %16 = arith.andi %13, %15 : vector<2x2xi1>
    %17 = vector.broadcast %11 : f32 to vector<2x2xf32>
    %18 = arith.select %16, %17, %2 : vector<2x2xi1>, vector<2x2xf32>
    %c1 = arith.constant 1 : index
    %c0_7 = arith.constant 0 : index
    %c0_8 = arith.constant 0 : index
    %19 = vector.load %arg1[%c1, %c0_7, %c0_8] : memref<2x392x128xf32, #tpu.memory_space<vmem>>, vector<1x392x128xf32>
    %20 = vector.shape_cast %19 : vector<1x392x128xf32> to vector<392x128xf32>
    %21 = arith.mulf %4, %20 : vector<392x128xf32>
    %22 = vector.shape_cast %21 : vector<392x128xf32> to vector<1x392x128xf32>
    %cst_9 = arith.constant dense<0.000000e+00> : vector<1xf32>
    %23 = vector.multi_reduction <add>, %22, %cst_9 [1, 2] : vector<1x392x128xf32> to vector<1xf32>
    %24 = vector.shape_cast %23 : vector<1xf32> to vector<1x1x1xf32>
    %25 = vector.extract %24[0, 0, 0] : f32 from vector<1x1x1xf32>
    %c0_i32_10 = arith.constant 0 : i32
    %26 = vector.broadcast %c0_i32_10 : i32 to vector<2x2xi32>
    %27 = arith.cmpi eq, %0, %26 : vector<2x2xi32>
    %c1_i32 = arith.constant 1 : i32
    %28 = vector.broadcast %c1_i32 : i32 to vector<2x2xi32>
    %29 = arith.cmpi eq, %1, %28 : vector<2x2xi32>
    %30 = arith.andi %27, %29 : vector<2x2xi1>
    %31 = vector.broadcast %25 : f32 to vector<2x2xf32>
    %32 = arith.select %30, %31, %18 : vector<2x2xi1>, vector<2x2xf32>
    %c1_11 = arith.constant 1 : index
    %c0_12 = arith.constant 0 : index
    %c0_13 = arith.constant 0 : index
    %33 = vector.load %arg0[%c1_11, %c0_12, %c0_13] : memref<2x392x128xf32, #tpu.memory_space<vmem>>, vector<1x392x128xf32>
    %34 = vector.shape_cast %33 : vector<1x392x128xf32> to vector<392x128xf32>
    %c0_14 = arith.constant 0 : index
    %c0_15 = arith.constant 0 : index
    %c0_16 = arith.constant 0 : index
    %35 = vector.load %arg1[%c0_14, %c0_15, %c0_16] : memref<2x392x128xf32, #tpu.memory_space<vmem>>, vector<1x392x128xf32>
    %36 = vector.shape_cast %35 : vector<1x392x128xf32> to vector<392x128xf32>
    %37 = arith.mulf %34, %36 : vector<392x128xf32>
    %38 = vector.shape_cast %37 : vector<392x128xf32> to vector<1x392x128xf32>
    %cst_17 = arith.constant dense<0.000000e+00> : vector<1xf32>
    %39 = vector.multi_reduction <add>, %38, %cst_17 [1, 2] : vector<1x392x128xf32> to vector<1xf32>
    %40 = vector.shape_cast %39 : vector<1xf32> to vector<1x1x1xf32>
    %41 = vector.extract %40[0, 0, 0] : f32 from vector<1x1x1xf32>
    %c1_i32_18 = arith.constant 1 : i32
    %42 = vector.broadcast %c1_i32_18 : i32 to vector<2x2xi32>
    %43 = arith.cmpi eq, %0, %42 : vector<2x2xi32>
    %c0_i32_19 = arith.constant 0 : i32
    %44 = vector.broadcast %c0_i32_19 : i32 to vector<2x2xi32>
    %45 = arith.cmpi eq, %1, %44 : vector<2x2xi32>
    %46 = arith.andi %43, %45 : vector<2x2xi1>
    %47 = vector.broadcast %41 : f32 to vector<2x2xf32>
    %48 = arith.select %46, %47, %32 : vector<2x2xi1>, vector<2x2xf32>
    %c1_20 = arith.constant 1 : index
    %c0_21 = arith.constant 0 : index
    %c0_22 = arith.constant 0 : index
    %49 = vector.load %arg1[%c1_20, %c0_21, %c0_22] : memref<2x392x128xf32, #tpu.memory_space<vmem>>, vector<1x392x128xf32>
    %50 = vector.shape_cast %49 : vector<1x392x128xf32> to vector<392x128xf32>
    %51 = arith.mulf %34, %50 : vector<392x128xf32>
    %52 = vector.shape_cast %51 : vector<392x128xf32> to vector<1x392x128xf32>
    %cst_23 = arith.constant dense<0.000000e+00> : vector<1xf32>
    %53 = vector.multi_reduction <add>, %52, %cst_23 [1, 2] : vector<1x392x128xf32> to vector<1xf32>
    %54 = vector.shape_cast %53 : vector<1xf32> to vector<1x1x1xf32>
    %55 = vector.extract %54[0, 0, 0] : f32 from vector<1x1x1xf32>
    %c1_i32_24 = arith.constant 1 : i32
    %56 = vector.broadcast %c1_i32_24 : i32 to vector<2x2xi32>
    %57 = arith.cmpi eq, %0, %56 : vector<2x2xi32>
    %c1_i32_25 = arith.constant 1 : i32
    %58 = vector.broadcast %c1_i32_25 : i32 to vector<2x2xi32>
    %59 = arith.cmpi eq, %1, %58 : vector<2x2xi32>
    %60 = arith.andi %57, %59 : vector<2x2xi1>
    %61 = vector.broadcast %55 : f32 to vector<2x2xf32>
    %62 = arith.select %60, %61, %48 : vector<2x2xi1>, vector<2x2xf32>
    %c0_26 = arith.constant 0 : index
    %c0_27 = arith.constant 0 : index
    %63 = memref.load %arg2[%c0_26, %c0_27] : memref<1x2xf32, #tpu.memory_space<smem>>
    %64 = vector.broadcast %63 : f32 to vector<2x2xf32>
    %c1_i32_28 = arith.constant 1 : i32
    %65 = vector.broadcast %c1_i32_28 : i32 to vector<2x2xi32>
    %66 = arith.cmpi eq, %1, %65 : vector<2x2xi32>
    %c0_29 = arith.constant 0 : index
    %c1_30 = arith.constant 1 : index
    %67 = memref.load %arg2[%c0_29, %c1_30] : memref<1x2xf32, #tpu.memory_space<smem>>
    %68 = vector.broadcast %67 : f32 to vector<2x2xf32>
    %69 = arith.select %66, %68, %64 : vector<2x2xi1>, vector<2x2xf32>
    %70 = arith.addf %62, %69 : vector<2x2xf32>
    %71 = arith.negf %70 : vector<2x2xf32>
    %72 = math.exp %71 : vector<2x2xf32>
    %cst_31 = arith.constant 1.000000e+00 : f32
    %73 = vector.broadcast %cst_31 : f32 to vector<2x2xf32>
    %74 = arith.addf %73, %72 : vector<2x2xf32>
    %75 = arith.divf %73, %74 : vector<2x2xf32>
    %c0_32 = arith.constant 0 : index
    %c0_33 = arith.constant 0 : index
    %76 = vector.load %arg3[%c0_32, %c0_33] : memref<2x2xf32, #tpu.memory_space<vmem>>, vector<2x2xf32>
    tpu.vector_store %arg3[%c0_32, %c0_33], %75 {strides = array<i32>} : memref<2x2xf32, #tpu.memory_space<vmem>>, vector<2x2xf32>,
    return
  }
}

</mosaic_0001>

<llo_original>
// kernel: tpu_custom_call.1
$region0: #{tpu_custom_call.1}
  #allocation0 [shape = 'u32[]', space=smem, size = 0x4, offset = 0x4, fixed_abs, tag = 'smem constant byte address 0x4 - core index']
  #allocation1 [shape = 'u32[144,128]{1,0:T(1,128)}', space=vmem, size = 0x12000, scoped, tag = 'internal scratch']
  %s0 = inlined_call_operand.hbm [shape: f32[2,392,128], index: 0, kind: input, shape index: {}]
  %s1 = inlined_call_operand.hbm [shape: f32[2,392,128], index: 1, kind: input, shape index: {}]
  %s2 = inlined_call_operand.vmem [shape: f32[1,2], index: 2, kind: input, shape index: {}]
  %s3 = inlined_call_operand.hbm [shape: f32[2,2], index: 3, kind: output, shape index: {}]
  %s4 = sld [smem:[#allocation0]]
  $region34: #{tpu_custom_call.1} parent=0
    _
  %s6 = ssub.s32 1, %s4
  %s7 = scalar_select 0, %s6, %s4
  $region1: #{tpu_custom_call.1} parent=0
    #allocation2 [shape = 'u8[401408]{0}', space=vmem, size = 0x62000, scoped, tag = 'input window, operand 0, single buffered']
    #allocation3 [shape = 's32[1]{0}', space=sflag, size = 0x4, scoped, tag = 'scoped memory for tpu_custom_call.1']
    #allocation4 [shape = 's32[1]{0}', space=sflag, size = 0x4, scoped, tag = 'scoped memory for tpu_custom_call.1']
    #allocation5 [shape = 's32[1]{0}', space=sflag, size = 0x4, scoped, tag = 'scoped memory for tpu_custom_call.1']
    #allocation6 [shape = 'u8[401408]{0}', space=vmem, size = 0x62000, scoped, tag = 'input window, operand 1, single buffered']
    #allocation7 [shape = 's32[1]{0}', space=sflag, size = 0x4, scoped, tag = 'scoped memory for tpu_custom_call.1']
    #allocation8 [shape = 'u8[512]{0}', space=smem, size = 0x200, scoped, tag = 'input window, operand 2, single buffered']
    #allocation9 [shape = 'u8[1024]{0}', space=vmem, size = 0x400, scoped, tag = 'output window, operand 0, single buffered']
    %8 = vsyncpa [#allocation3], 0
    %9 = vsyncpa [#allocation7], 0
    %10 = vsyncpa [#allocation5], 0
    %11 = vsyncpa [#allocation4], 0
    // Predicated region
    $region2: #{tpu_custom_call.1} parent=1 // pred_check
      _
    $region3: #{tpu_custom_call.1} parent=1 // pred_check_branch
      %13 = sbr.rel (0) target = $region5
    $region4: #{tpu_custom_call.1} parent=1 // pred_region
      %s15 = ssub.s32 12544, 12544
      %16 = vsyncadd [#allocation3], %s15
      %s17 = sshll.u32 [#allocation2], 4
      %s18 = int_to_ptr.vmem [resolvable:$true] %s17
      %23 = dma.hbm_to_vmem [thread:$0]  %s0, 12544, %s18, [#allocation3], 128, 128, 8
    $region5: #{tpu_custom_call.1} parent=1 // pred_fallthru
      _
    // Predicated region
    $region6: #{tpu_custom_call.1} parent=1 // pred_check
      _
    $region7: #{tpu_custom_call.1} parent=1 // pred_check_branch
      %25 = sbr.rel (0) target = $region9
    $region8: #{tpu_custom_call.1} parent=1 // pred_region
      %s27 = ssub.s32 12544, 12544
      %28 = vsyncadd [#allocation7], %s27
      %s29 = sshll.u32 [#allocation6], 4
      %s30 = int_to_ptr.vmem [resolvable:$true] %s29
      %35 = dma.hbm_to_vmem [thread:$0]  %s1, 12544, %s30, [#allocation7], 128, 128, 8
    $region9: #{tpu_custom_call.1} parent=1 // pred_fallthru
      _
    // Predicated region
    $region10: #{tpu_custom_call.1} parent=1 // pred_check
      _
    $region11: #{tpu_custom_call.1} parent=1 // pred_check_branch
      %37 = sbr.rel (0) target = $region13
    $region12: #{tpu_custom_call.1} parent=1 // pred_region
      %s39 = ssub.s32 16, 16
      %40 = vsyncadd [#allocation5], %s39
      %s42 = sshll.u32 %s2, 4
      %s43 = int_to_ptr.vmem [resolvable:$true] %s42
      %45 = dma.vmem_to_smem %s43, 16, [#allocation8], [#allocation5]
    $region13: #{tpu_custom_call.1} parent=1 // pred_fallthru
      _
    // Predicated region
    $region14: #{tpu_custom_call.1} parent=1 // pred_check
      _
    $region15: #{tpu_custom_call.1} parent=1 // pred_check_branch
      %47 = sbr.rel (0) target = $region17
    $region16: #{tpu_custom_call.1} parent=1 // pred_region
      %48 = dma.done [#allocation3], 12544
    $region17: #{tpu_custom_call.1} parent=1 // pred_fallthru
      _
    // Predicated region
    $region18: #{tpu_custom_call.1} parent=1 // pred_check
      _
    $region19: #{tpu_custom_call.1} parent=1 // pred_check_branch
      %50 = sbr.rel (0) target = $region21
    $region20: #{tpu_custom_call.1} parent=1 // pred_region
      %51 = dma.done [#allocation7], 12544
    $region21: #{tpu_custom_call.1} parent=1 // pred_fallthru
      _
    // Predicated region
    $region22: #{tpu_custom_call.1} parent=1 // pred_check
      _
    $region23: #{tpu_custom_call.1} parent=1 // pred_check_branch
      %53 = sbr.rel (0) target = $region25
    $region24: #{tpu_custom_call.1} parent=1 // pred_region
      %54 = dma.done [#allocation5], 16
    $region25: #{tpu_custom_call.1} parent=1 // pred_fallthru
      _
    %55 = sfence
    %v56 = vlaneseq
    %v57 = vshrl.u32 %v56, 7
    %v58 = vlaneseq
    %v59 = vand.u32 %v58, 127
    %v60 = vld [vmem:[#allocation2] sm:$0xff]
    %v61 = vld [vmem:[#allocation2 + $0x8] sm:$0xff]
    %v62 = vld [vmem:[#allocation2 + $0x10] sm:$0xff]
    %v63 = vld [vmem:[#allocation2 + $0x18] sm:$0xff]
    %v64 = vld [vmem:[#allocation2 + $0x20] sm:$0xff]
    %v65 = vld [vmem:[#allocation2 + $0x28] sm:$0xff]
    %v66 = vld [vmem:[#allocation2 + $0x30] sm:$0xff]
    %v67 = vld [vmem:[#allocation2 + $0x38] sm:$0xff]
    %v68 = vld [vmem:[#allocation2 + $0x40] sm:$0xff]
    %v69 = vld [vmem:[#allocation2 + $0x48] sm:$0xff]
    %v70 = vld [vmem:[#allocation2 + $0x50] sm:$0xff]
    %v71 = vld [vmem:[#allocation2 + $0x58] sm:$0xff]
    %v72 = vld [vmem:[#allocation2 + $0x60] sm:$0xff]
    %v73 = vld [vmem:[#allocation2 + $0x68] sm:$0xff]
    %v74 = vld [vmem:[#allocation2 + $0x70] sm:$0xff]
    %v75 = vld [vmem:[#allocation2 + $0x78] sm:$0xff]
    %v76 = vld [vmem:[#allocation2 + $0x80] sm:$0xff]
    %v77 = vld [vmem:[#allocation2 + $0x88] sm:$0xff]
    %v78 = vld [vmem:[#allocation2 + $0x90] sm:$0xff]
    %v79 = vld [vmem:[#allocation2 + $0x98] sm:$0xff]
    %v80 = vld [vmem:[#allocation2 + $0xa0] sm:$0xff]
    %v81 = vld [vmem:[#allocation2 + $0xa8] sm:$0xff]
    %v82 = vld [vmem:[#allocation2 + $0xb0] sm:$0xff]
    %v83 = vld [vmem:[#allocation2 + $0xb8] sm:$0xff]
    %v84 = vld [vmem:[#allocation2 + $0xc0] sm:$0xff]
    %v85 = vld [vmem:[#allocation2 + $0xc8] sm:$0xff]
    %v86 = vld [vmem:[#allocation2 + $0xd0] sm:$0xff]
    %v87 = vld [vmem:[#allocation2 + $0xd8] sm:$0xff]
    %v88 = vld [vmem:[#allocation2 + $0xe0] sm:$0xff]
    %v89 = vld [vmem:[#allocation2 + $0xe8] sm:$0xff]
    %v90 = vld [vmem:[#allocation2 + $0xf0] sm:$0xff]
    %v91 = vld [vmem:[#allocation2 + $0xf8] sm:$0xff]
    %v92 = vld [vmem:[#allocation2 + $0x100] sm:$0xff]
    %v93 = vld [vmem:[#allocation2 + $0x108] sm:$0xff]
    %v94 = vld [vmem:[#allocation2 + $0x110] sm:$0xff]
    %v95 = vld [vmem:[#allocation2 + $0x118] sm:$0xff]
    %v96 = vld [vmem:[#allocation2 + $0x120] sm:$0xff]
    %v97 = vld [vmem:[#allocation2 + $0x128] sm:$0xff]
    %v98 = vld [vmem:[#allocation2 + $0x130] sm:$0xff]
    %v99 = vld [vmem:[#allocation2 + $0x138] sm:$0xff]
    %v100 = vld [vmem:[#allocation2 + $0x140] sm:$0xff]
    %v101 = vld [vmem:[#allocation2 + $0x148] sm:$0xff]
    %v102 = vld [vmem:[#allocation2 + $0x150] sm:$0xff]
    %v103 = vld [vmem:[#allocation2 + $0x158] sm:$0xff]
    %v104 = vld [vmem:[#allocation2 + $0x160] sm:$0xff]
    %v105 = vld [vmem:[#allocation2 + $0x168] sm:$0xff]
    %v106 = vld [vmem:[#allocation2 + $0x170] sm:$0xff]
    %v107 = vld [vmem:[#allocation2 + $0x178] sm:$0xff]
    %v108 = vld [vmem:[#allocation2 + $0x180] sm:$0xff]
    %v109 = vld [vmem:[#allocation6] sm:$0xff]
    %v110 = vld [vmem:[#allocation6 + $0x8] sm:$0xff]
    %v111 = vld [vmem:[#allocation6 + $0x10] sm:$0xff]
    %v112 = vld [vmem:[#allocation6 + $0x18] sm:$0xff]
    %v113 = vld [vmem:[#allocation6 + $0x20] sm:$0xff]
    %v114 = vld [vmem:[#allocation6 + $0x28] sm:$0xff]
    %v115 = vld [vmem:[#allocation6 + $0x30] sm:$0xff]
    %v116 = vld [vmem:[#allocation6 + $0x38] sm:$0xff]
    %v117 = vld [vmem:[#allocation6 + $0x40] sm:$0xff]
    %v118 = vld [vmem:[#allocation6 + $0x48] sm:$0xff]
    %v119 = vld [vmem:[#allocation6 + $0x50] sm:$0xff]
    %v120 = vld [vmem:[#allocation6 + $0x58] sm:$0xff]
    %v121 = vld [vmem:[#allocation6 + $0x60] sm:$0xff]
    %v122 = vld [vmem:[#allocation6 + $0x68] sm:$0xff]
    %v123 = vld [vmem:[#allocation6 + $0x70] sm:$0xff]
    %v124 = vld [vmem:[#allocation6 + $0x78] sm:$0xff]
    %v125 = vld [vmem:[#allocation6 + $0x80] sm:$0xff]
    %v126 = vld [vmem:[#allocation6 + $0x88] sm:$0xff]
    %v127 = vld [vmem:[#allocation6 + $0x90] sm:$0xff]
    %v128 = vld [vmem:[#allocation6 + $0x98] sm:$0xff]
    %v129 = vld [vmem:[#allocation6 + $0xa0] sm:$0xff]
    %v130 = vld [vmem:[#allocation6 + $0xa8] sm:$0xff]
    %v131 = vld [vmem:[#allocation6 + $0xb0] sm:$0xff]
    %v132 = vld [vmem:[#allocation6 + $0xb8] sm:$0xff]
    %v133 = vld [vmem:[#allocation6 + $0xc0] sm:$0xff]
    %v134 = vld [vmem:[#allocation6 + $0xc8] sm:$0xff]
    %v135 = vld [vmem:[#allocation6 + $0xd0] sm:$0xff]
    %v136 = vld [vmem:[#allocation6 + $0xd8] sm:$0xff]
    %v137 = vld [vmem:[#allocation6 + $0xe0] sm:$0xff]
    %v138 = vld [vmem:[#allocation6 + $0xe8] sm:$0xff]
    %v139 = vld [vmem:[#allocation6 + $0xf0] sm:$0xff]
    %v140 = vld [vmem:[#allocation6 + $0xf8] sm:$0xff]
    %v141 = vld [vmem:[#allocation6 + $0x100] sm:$0xff]
    %v142 = vld [vmem:[#allocation6 + $0x108] sm:$0xff]
    %v143 = vld [vmem:[#allocation6 + $0x110] sm:$0xff]
    %v144 = vld [vmem:[#allocation6 + $0x118] sm:$0xff]
    %v145 = vld [vmem:[#allocation6 + $0x120] sm:$0xff]
    %v146 = vld [vmem:[#allocation6 + $0x128] sm:$0xff]
    %v147 = vld [vmem:[#allocation6 + $0x130] sm:$0xff]
    %v148 = vld [vmem:[#allocation6 + $0x138] sm:$0xff]
    %v149 = vld [vmem:[#allocation6 + $0x140] sm:$0xff]
    %v150 = vld [vmem:[#allocation6 + $0x148] sm:$0xff]
    %v151 = vld [vmem:[#allocation6 + $0x150] sm:$0xff]
    %v152 = vld [vmem:[#allocation6 + $0x158] sm:$0xff]
    %v153 = vld [vmem:[#allocation6 + $0x160] sm:$0xff]
    %v154 = vld [vmem:[#allocation6 + $0x168] sm:$0xff]
    %v155 = vld [vmem:[#allocation6 + $0x170] sm:$0xff]
    %v156 = vld [vmem:[#allocation6 + $0x178] sm:$0xff]
    %v157 = vld [vmem:[#allocation6 + $0x180] sm:$0xff]
    %v158 = vmul.f32 %v60, %v109
    %v159 = vmul.f32 %v61, %v110
    %v160 = vmul.f32 %v62, %v111
    %v161 = vmul.f32 %v63, %v112
    %v162 = vmul.f32 %v64, %v113
    %v163 = vmul.f32 %v65, %v114
    %v164 = vmul.f32 %v66, %v115
    %v165 = vmul.f32 %v67, %v116
    %v166 = vmul.f32 %v68, %v117
    %v167 = vmul.f32 %v69, %v118
    %v168 = vmul.f32 %v70, %v119
    %v169 = vmul.f32 %v71, %v120
    %v170 = vmul.f32 %v72, %v121
    %v171 = vmul.f32 %v73, %v122
    %v172 = vmul.f32 %v74, %v123
    %v173 = vmul.f32 %v75, %v124
    %v174 = vmul.f32 %v76, %v125
    %v175 = vmul.f32 %v77, %v126
    %v176 = vmul.f32 %v78, %v127
    %v177 = vmul.f32 %v79, %v128
    %v178 = vmul.f32 %v80, %v129
    %v179 = vmul.f32 %v81, %v130
    %v180 = vmul.f32 %v82, %v131
    %v181 = vmul.f32 %v83, %v132
    %v182 = vmul.f32 %v84, %v133
    %v183 = vmul.f32 %v85, %v134
    %v184 = vmul.f32 %v86, %v135
    %v185 = vmul.f32 %v87, %v136
    %v186 = vmul.f32 %v88, %v137
    %v187 = vmul.f32 %v89, %v138
    %v188 = vmul.f32 %v90, %v139
    %v189 = vmul.f32 %v91, %v140
    %v190 = vmul.f32 %v92, %v141
    %v191 = vmul.f32 %v93, %v142
    %v192 = vmul.f32 %v94, %v143
    %v193 = vmul.f32 %v95, %v144
    %v194 = vmul.f32 %v96, %v145
    %v195 = vmul.f32 %v97, %v146
    %v196 = vmul.f32 %v98, %v147
    %v197 = vmul.f32 %v99, %v148
    %v198 = vmul.f32 %v100, %v149
    %v199 = vmul.f32 %v101, %v150
    %v200 = vmul.f32 %v102, %v151
    %v201 = vmul.f32 %v103, %v152
    %v202 = vmul.f32 %v104, %v153
    %v203 = vmul.f32 %v105, %v154
    %v204 = vmul.f32 %v106, %v155
    %v205 = vmul.f32 %v107, %v156
    %v206 = vmul.f32 %v108, %v157
    %v207 = vadd.f32 %v158, %v159
    %v208 = vadd.f32 %v207, %v160
    %v209 = vadd.f32 %v208, %v161
    %v210 = vadd.f32 %v209, %v162
    %v211 = vadd.f32 %v210, %v163
    %v212 = vadd.f32 %v211, %v164
    %v213 = vadd.f32 %v212, %v165
    %v214 = vadd.f32 %v213, %v166
    %v215 = vadd.f32 %v214, %v167
    %v216 = vadd.f32 %v215, %v168
    %v217 = vadd.f32 %v216, %v169
    %v218 = vadd.f32 %v217, %v170
    %v219 = vadd.f32 %v218, %v171
    %v220 = vadd.f32 %v219, %v172
    %v221 = vadd.f32 %v220, %v173
    %v222 = vadd.f32 %v221, %v174
    %v223 = vadd.f32 %v222, %v175
    %v224 = vadd.f32 %v223, %v176
    %v225 = vadd.f32 %v224, %v177
    %v226 = vadd.f32 %v225, %v178
    %v227 = vadd.f32 %v226, %v179
    %v228 = vadd.f32 %v227, %v180
    %v229 = vadd.f32 %v228, %v181
    %v230 = vadd.f32 %v229, %v182
    %v231 = vadd.f32 %v230, %v183
    %v232 = vadd.f32 %v231, %v184
    %v233 = vadd.f32 %v232, %v185
    %v234 = vadd.f32 %v233, %v186
    %v235 = vadd.f32 %v234, %v187
    %v236 = vadd.f32 %v235, %v188
    %v237 = vadd.f32 %v236, %v189
    %v238 = vadd.f32 %v237, %v190
    %v239 = vadd.f32 %v238, %v191
    %v240 = vadd.f32 %v239, %v192
    %v241 = vadd.f32 %v240, %v193
    %v242 = vadd.f32 %v241, %v194
    %v243 = vadd.f32 %v242, %v195
    %v244 = vadd.f32 %v243, %v196
    %v245 = vadd.f32 %v244, %v197
    %v246 = vadd.f32 %v245, %v198
    %v247 = vadd.f32 %v246, %v199
    %v248 = vadd.f32 %v247, %v200
    %v249 = vadd.f32 %v248, %v201
    %v250 = vadd.f32 %v249, %v202
    %v251 = vadd.f32 %v250, %v203
    %v252 = vadd.f32 %v251, %v204
    %v253 = vadd.f32 %v252, %v205
    %v254 = vadd.f32 %v253, %v206
    %255 = vadd.xlane.f32.xlu0 %v254
    %v256 = vpop.xlane.xlu0 %255
    %v257 = vrot.slane %v256, 4
    %v258 = vadd.f32 %v256, %v257
    %v259 = vrot.slane %v258, 2
    %v260 = vadd.f32 %v258, %v259
    %v261 = vrot.slane %v260, 1
    %v262 = vadd.f32 %v260, %v261
    %s263 = vtos %v262
    %vm264 = vcmp.eq.s32.totalorder %v57, 0
    %vm265 = vcmp.eq.s32.totalorder %v59, 0
    %vm266 = vmand %vm264, %vm265
    %v267 = vstv %s263
    %v268 = vsel %vm266, %v267, 0.0
    %s269 = scalar_lea.vmem [#allocation6], 392
    %v270 = vld [vmem:[%s269] sm:$0xff]
    %v271 = vld [vmem:[%s269 + $0x8] sm:$0xff]
    %v272 = vld [vmem:[%s269 + $0x10] sm:$0xff]
    %v273 = vld [vmem:[%s269 + $0x18] sm:$0xff]
    %v274 = vld [vmem:[%s269 + $0x20] sm:$0xff]
    %v275 = vld [vmem:[%s269 + $0x28] sm:$0xff]
    %v276 = vld [vmem:[%s269 + $0x30] sm:$0xff]
    %v277 = vld [vmem:[%s269 + $0x38] sm:$0xff]
    %v278 = vld [vmem:[%s269 + $0x40] sm:$0xff]
    %v279 = vld [vmem:[%s269 + $0x48] sm:$0xff]
    %v280 = vld [vmem:[%s269 + $0x50] sm:$0xff]
    %v281 = vld [vmem:[%s269 + $0x58] sm:$0xff]
    %v282 = vld [vmem:[%s269 + $0x60] sm:$0xff]
    %v283 = vld [vmem:[%s269 + $0x68] sm:$0xff]
    %v284 = vld [vmem:[%s269 + $0x70] sm:$0xff]
    %v285 = vld [vmem:[%s269 + $0x78] sm:$0xff]
    %v286 = vld [vmem:[%s269 + $0x80] sm:$0xff]
    %v287 = vld [vmem:[%s269 + $0x88] sm:$0xff]
    %v288 = vld [vmem:[%s269 + $0x90] sm:$0xff]
    %v289 = vld [vmem:[%s269 + $0x98] sm:$0xff]
    %v290 = vld [vmem:[%s269 + $0xa0] sm:$0xff]
    %v291 = vld [vmem:[%s269 + $0xa8] sm:$0xff]
    %v292 = vld [vmem:[%s269 + $0xb0] sm:$0xff]
    %v293 = vld [vmem:[%s269 + $0xb8] sm:$0xff]
    %v294 = vld [vmem:[%s269 + $0xc0] sm:$0xff]
    %v295 = vld [vmem:[%s269 + $0xc8] sm:$0xff]
    %v296 = vld [vmem:[%s269 + $0xd0] sm:$0xff]
    %v297 = vld [vmem:[%s269 + $0xd8] sm:$0xff]
    %v298 = vld [vmem:[%s269 + $0xe0] sm:$0xff]
    %v299 = vld [vmem:[%s269 + $0xe8] sm:$0xff]
    %v300 = vld [vmem:[%s269 + $0xf0] sm:$0xff]
    %v301 = vld [vmem:[%s269 + $0xf8] sm:$0xff]
    %v302 = vld [vmem:[%s269 + $0x100] sm:$0xff]
    %v303 = vld [vmem:[%s269 + $0x108] sm:$0xff]
    %v304 = vld [vmem:[%s269 + $0x110] sm:$0xff]
    %v305 = vld [vmem:[%s269 + $0x118] sm:$0xff]
    %v306 = vld [vmem:[%s269 + $0x120] sm:$0xff]
    %v307 = vld [vmem:[%s269 + $0x128] sm:$0xff]
    %v308 = vld [vmem:[%s269 + $0x130] sm:$0xff]
    %v309 = vld [vmem:[%s269 + $0x138] sm:$0xff]
    %v310 = vld [vmem:[%s269 + $0x140] sm:$0xff]
    %v311 = vld [vmem:[%s269 + $0x148] sm:$0xff]
    %v312 = vld [vmem:[%s269 + $0x150] sm:$0xff]
    %v313 = vld [vmem:[%s269 + $0x158] sm:$0xff]
    %v314 = vld [vmem:[%s269 + $0x160] sm:$0xff]
    %v315 = vld [vmem:[%s269 + $0x168] sm:$0xff]
    %v316 = vld [vmem:[%s269 + $0x170] sm:$0xff]
    %v317 = vld [vmem:[%s269 + $0x178] sm:$0xff]
    %v318 = vld [vmem:[%s269 + $0x180] sm:$0xff]
    %v319 = vmul.f32 %v60, %v270
    %v320 = vmul.f32 %v61, %v271
    %v321 = vmul.f32 %v62, %v272
    %v322 = vmul.f32 %v63, %v273
    %v323 = vmul.f32 %v64, %v274
    %v324 = vmul.f32 %v65, %v275
    %v325 = vmul.f32 %v66, %v276
    %v326 = vmul.f32 %v67, %v277
    %v327 = vmul.f32 %v68, %v278
    %v328 = vmul.f32 %v69, %v279
    %v329 = vmul.f32 %v70, %v280
    %v330 = vmul.f32 %v71, %v281
    %v331 = vmul.f32 %v72, %v282
    %v332 = vmul.f32 %v73, %v283
    %v333 = vmul.f32 %v74, %v284
    %v334 = vmul.f32 %v75, %v285
    %v335 = vmul.f32 %v76, %v286
    %v336 = vmul.f32 %v77, %v287
    %v337 = vmul.f32 %v78, %v288
    %v338 = vmul.f32 %v79, %v289
    %v339 = vmul.f32 %v80, %v290
    %v340 = vmul.f32 %v81, %v291
    %v341 = vmul.f32 %v82, %v292
    %v342 = vmul.f32 %v83, %v293
    %v343 = vmul.f32 %v84, %v294
    %v344 = vmul.f32 %v85, %v295
    %v345 = vmul.f32 %v86, %v296
    %v346 = vmul.f32 %v87, %v297
    %v347 = vmul.f32 %v88, %v298
    %v348 = vmul.f32 %v89, %v299
    %v349 = vmul.f32 %v90, %v300
    %v350 = vmul.f32 %v91, %v301
    %v351 = vmul.f32 %v92, %v302
    %v352 = vmul.f32 %v93, %v303
    %v353 = vmul.f32 %v94, %v304
    %v354 = vmul.f32 %v95, %v305
    %v355 = vmul.f32 %v96, %v306
    %v356 = vmul.f32 %v97, %v307
    %v357 = vmul.f32 %v98, %v308
    %v358 = vmul.f32 %v99, %v309
    %v359 = vmul.f32 %v100, %v310
    %v360 = vmul.f32 %v101, %v311
    %v361 = vmul.f32 %v102, %v312
    %v362 = vmul.f32 %v103, %v313
    %v363 = vmul.f32 %v104, %v314
    %v364 = vmul.f32 %v105, %v315
    %v365 = vmul.f32 %v106, %v316
    %v366 = vmul.f32 %v107, %v317
    %v367 = vmul.f32 %v108, %v318
    %v368 = vadd.f32 %v319, %v320
    %v369 = vadd.f32 %v368, %v321
    %v370 = vadd.f32 %v369, %v322
    %v371 = vadd.f32 %v370, %v323
    %v372 = vadd.f32 %v371, %v324
    %v373 = vadd.f32 %v372, %v325
    %v374 = vadd.f32 %v373, %v326
    %v375 = vadd.f32 %v374, %v327
    %v376 = vadd.f32 %v375, %v328
    %v377 = vadd.f32 %v376, %v329
    %v378 = vadd.f32 %v377, %v330
    %v379 = vadd.f32 %v378, %v331
    %v380 = vadd.f32 %v379, %v332
    %v381 = vadd.f32 %v380, %v333
    %v382 = vadd.f32 %v381, %v334
    %v383 = vadd.f32 %v382, %v335
    %v384 = vadd.f32 %v383, %v336
    %v385 = vadd.f32 %v384, %v337
    %v386 = vadd.f32 %v385, %v338
    %v387 = vadd.f32 %v386, %v339
    %v388 = vadd.f32 %v387, %v340
    %v389 = vadd.f32 %v388, %v341
    %v390 = vadd.f32 %v389, %v342
    %v391 = vadd.f32 %v390, %v343
    %v392 = vadd.f32 %v391, %v344
    %v393 = vadd.f32 %v392, %v345
    %v394 = vadd.f32 %v393, %v346
    %v395 = vadd.f32 %v394, %v347
    %v396 = vadd.f32 %v395, %v348
    %v397 = vadd.f32 %v396, %v349
    %v398 = vadd.f32 %v397, %v350
    %v399 = vadd.f32 %v398, %v351
    %v400 = vadd.f32 %v399, %v352
    %v401 = vadd.f32 %v400, %v353
    %v402 = vadd.f32 %v401, %v354
    %v403 = vadd.f32 %v402, %v355
    %v404 = vadd.f32 %v403, %v356
    %v405 = vadd.f32 %v404, %v357
    %v406 = vadd.f32 %v405, %v358
    %v407 = vadd.f32 %v406, %v359
    %v408 = vadd.f32 %v407, %v360
    %v409 = vadd.f32 %v408, %v361
    %v410 = vadd.f32 %v409, %v362
    %v411 = vadd.f32 %v410, %v363
    %v412 = vadd.f32 %v411, %v364
    %v413 = vadd.f32 %v412, %v365
    %v414 = vadd.f32 %v413, %v366
    %v415 = vadd.f32 %v414, %v367
    %416 = vadd.xlane.f32.xlu0 %v415
    %v417 = vpop.xlane.xlu0 %416
    %v418 = vrot.slane %v417, 4
    %v419 = vadd.f32 %v417, %v418
    %v420 = vrot.slane %v419, 2
    %v421 = vadd.f32 %v419, %v420
    %v422 = vrot.slane %v421, 1
    %v423 = vadd.f32 %v421, %v422
    %s424 = vtos %v423
    %vm425 = vcmp.eq.s32.totalorder %v59, 1
    %vm426 = vmand %vm264, %vm425
    %v427 = vstv %s424
    %v428 = vsel %vm426, %v427, %v268
    %s429 = scalar_lea.vmem [#allocation2], 392
    %v430 = vld [vmem:[%s429] sm:$0xff]
    %v431 = vld [vmem:[%s429 + $0x8] sm:$0xff]
    %v432 = vld [vmem:[%s429 + $0x10] sm:$0xff]
    %v433 = vld [vmem:[%s429 + $0x18] sm:$0xff]
    %v434 = vld [vmem:[%s429 + $0x20] sm:$0xff]
    %v435 = vld [vmem:[%s429 + $0x28] sm:$0xff]
    %v436 = vld [vmem:[%s429 + $0x30] sm:$0xff]
    %v437 = vld [vmem:[%s429 + $0x38] sm:$0xff]
    %v438 = vld [vmem:[%s429 + $0x40] sm:$0xff]
    %v439 = vld [vmem:[%s429 + $0x48] sm:$0xff]
    %v440 = vld [vmem:[%s429 + $0x50] sm:$0xff]
    %v441 = vld [vmem:[%s429 + $0x58] sm:$0xff]
    %v442 = vld [vmem:[%s429 + $0x60] sm:$0xff]
    %v443 = vld [vmem:[%s429 + $0x68] sm:$0xff]
    %v444 = vld [vmem:[%s429 + $0x70] sm:$0xff]
    %v445 = vld [vmem:[%s429 + $0x78] sm:$0xff]
    %v446 = vld [vmem:[%s429 + $0x80] sm:$0xff]
    %v447 = vld [vmem:[%s429 + $0x88] sm:$0xff]
    %v448 = vld [vmem:[%s429 + $0x90] sm:$0xff]
    %v449 = vld [vmem:[%s429 + $0x98] sm:$0xff]
    %v450 = vld [vmem:[%s429 + $0xa0] sm:$0xff]
    %v451 = vld [vmem:[%s429 + $0xa8] sm:$0xff]
    %v452 = vld [vmem:[%s429 + $0xb0] sm:$0xff]
    %v453 = vld [vmem:[%s429 + $0xb8] sm:$0xff]
    %v454 = vld [vmem:[%s429 + $0xc0] sm:$0xff]
    %v455 = vld [vmem:[%s429 + $0xc8] sm:$0xff]
    %v456 = vld [vmem:[%s429 + $0xd0] sm:$0xff]
    %v457 = vld [vmem:[%s429 + $0xd8] sm:$0xff]
    %v458 = vld [vmem:[%s429 + $0xe0] sm:$0xff]
    %v459 = vld [vmem:[%s429 + $0xe8] sm:$0xff]
    %v460 = vld [vmem:[%s429 + $0xf0] sm:$0xff]
    %v461 = vld [vmem:[%s429 + $0xf8] sm:$0xff]
    %v462 = vld [vmem:[%s429 + $0x100] sm:$0xff]
    %v463 = vld [vmem:[%s429 + $0x108] sm:$0xff]
    %v464 = vld [vmem:[%s429 + $0x110] sm:$0xff]
    %v465 = vld [vmem:[%s429 + $0x118] sm:$0xff]
    %v466 = vld [vmem:[%s429 + $0x120] sm:$0xff]
    %v467 = vld [vmem:[%s429 + $0x128] sm:$0xff]
    %v468 = vld [vmem:[%s429 + $0x130] sm:$0xff]
    %v469 = vld [vmem:[%s429 + $0x138] sm:$0xff]
    %v470 = vld [vmem:[%s429 + $0x140] sm:$0xff]
    %v471 = vld [vmem:[%s429 + $0x148] sm:$0xff]
    %v472 = vld [vmem:[%s429 + $0x150] sm:$0xff]
    %v473 = vld [vmem:[%s429 + $0x158] sm:$0xff]
    %v474 = vld [vmem:[%s429 + $0x160] sm:$0xff]
    %v475 = vld [vmem:[%s429 + $0x168] sm:$0xff]
    %v476 = vld [vmem:[%s429 + $0x170] sm:$0xff]
    %v477 = vld [vmem:[%s429 + $0x178] sm:$0xff]
    %v478 = vld [vmem:[%s429 + $0x180] sm:$0xff]
    %v479 = vmul.f32 %v430, %v109
    %v480 = vmul.f32 %v431, %v110
    %v481 = vmul.f32 %v432, %v111
    %v482 = vmul.f32 %v433, %v112
    %v483 = vmul.f32 %v434, %v113
    %v484 = vmul.f32 %v435, %v114
    %v485 = vmul.f32 %v436, %v115
    %v486 = vmul.f32 %v437, %v116
    %v487 = vmul.f32 %v438, %v117
    %v488 = vmul.f32 %v439, %v118
    %v489 = vmul.f32 %v440, %v119
    %v490 = vmul.f32 %v441, %v120
    %v491 = vmul.f32 %v442, %v121
    %v492 = vmul.f32 %v443, %v122
    %v493 = vmul.f32 %v444, %v123
    %v494 = vmul.f32 %v445, %v124
    %v495 = vmul.f32 %v446, %v125
    %v496 = vmul.f32 %v447, %v126
    %v497 = vmul.f32 %v448, %v127
    %v498 = vmul.f32 %v449, %v128
    %v499 = vmul.f32 %v450, %v129
    %v500 = vmul.f32 %v451, %v130
    %v501 = vmul.f32 %v452, %v131
    %v502 = vmul.f32 %v453, %v132
    %v503 = vmul.f32 %v454, %v133
    %v504 = vmul.f32 %v455, %v134
    %v505 = vmul.f32 %v456, %v135
    %v506 = vmul.f32 %v457, %v136
    %v507 = vmul.f32 %v458, %v137
    %v508 = vmul.f32 %v459, %v138
    %v509 = vmul.f32 %v460, %v139
    %v510 = vmul.f32 %v461, %v140
    %v511 = vmul.f32 %v462, %v141
    %v512 = vmul.f32 %v463, %v142
    %v513 = vmul.f32 %v464, %v143
    %v514 = vmul.f32 %v465, %v144
    %v515 = vmul.f32 %v466, %v145
    %v516 = vmul.f32 %v467, %v146
    %v517 = vmul.f32 %v468, %v147
    %v518 = vmul.f32 %v469, %v148
    %v519 = vmul.f32 %v470, %v149
    %v520 = vmul.f32 %v471, %v150
    %v521 = vmul.f32 %v472, %v151
    %v522 = vmul.f32 %v473, %v152
    %v523 = vmul.f32 %v474, %v153
    %v524 = vmul.f32 %v475, %v154
    %v525 = vmul.f32 %v476, %v155
    %v526 = vmul.f32 %v477, %v156
    %v527 = vmul.f32 %v478, %v157
    %v528 = vadd.f32 %v479, %v480
    %v529 = vadd.f32 %v528, %v481
    %v530 = vadd.f32 %v529, %v482
    %v531 = vadd.f32 %v530, %v483
    %v532 = vadd.f32 %v531, %v484
    %v533 = vadd.f32 %v532, %v485
    %v534 = vadd.f32 %v533, %v486
    %v535 = vadd.f32 %v534, %v487
    %v536 = vadd.f32 %v535, %v488
    %v537 = vadd.f32 %v536, %v489
    %v538 = vadd.f32 %v537, %v490
    %v539 = vadd.f32 %v538, %v491
    %v540 = vadd.f32 %v539, %v492
    %v541 = vadd.f32 %v540, %v493
    %v542 = vadd.f32 %v541, %v494
    %v543 = vadd.f32 %v542, %v495
    %v544 = vadd.f32 %v543, %v496
    %v545 = vadd.f32 %v544, %v497
    %v546 = vadd.f32 %v545, %v498
    %v547 = vadd.f32 %v546, %v499
    %v548 = vadd.f32 %v547, %v500
    %v549 = vadd.f32 %v548, %v501
    %v550 = vadd.f32 %v549, %v502
    %v551 = vadd.f32 %v550, %v503
    %v552 = vadd.f32 %v551, %v504
    %v553 = vadd.f32 %v552, %v505
    %v554 = vadd.f32 %v553, %v506
    %v555 = vadd.f32 %v554, %v507
    %v556 = vadd.f32 %v555, %v508
    %v557 = vadd.f32 %v556, %v509
    %v558 = vadd.f32 %v557, %v510
    %v559 = vadd.f32 %v558, %v511
    %v560 = vadd.f32 %v559, %v512
    %v561 = vadd.f32 %v560, %v513
    %v562 = vadd.f32 %v561, %v514
    %v563 = vadd.f32 %v562, %v515
    %v564 = vadd.f32 %v563, %v516
    %v565 = vadd.f32 %v564, %v517
    %v566 = vadd.f32 %v565, %v518
    %v567 = vadd.f32 %v566, %v519
    %v568 = vadd.f32 %v567, %v520
    %v569 = vadd.f32 %v568, %v521
    %v570 = vadd.f32 %v569, %v522
    %v571 = vadd.f32 %v570, %v523
    %v572 = vadd.f32 %v571, %v524
    %v573 = vadd.f32 %v572, %v525
    %v574 = vadd.f32 %v573, %v526
    %v575 = vadd.f32 %v574, %v527
    %576 = vadd.xlane.f32.xlu0 %v575
    %v577 = vpop.xlane.xlu0 %576
    %v578 = vrot.slane %v577, 4
    %v579 = vadd.f32 %v577, %v578
    %v580 = vrot.slane %v579, 2
    %v581 = vadd.f32 %v579, %v580
    %v582 = vrot.slane %v581, 1
    %v583 = vadd.f32 %v581, %v582
    %s584 = vtos %v583
    %vm585 = vcmp.eq.s32.totalorder %v57, 1
    %vm586 = vmand %vm585, %vm265
    %v587 = vstv %s584
    %v588 = vsel %vm586, %v587, %v428
    %v589 = vmul.f32 %v430, %v270
    %v590 = vmul.f32 %v431, %v271
    %v591 = vmul.f32 %v432, %v272
    %v592 = vmul.f32 %v433, %v273
    %v593 = vmul.f32 %v434, %v274
    %v594 = vmul.f32 %v435, %v275
    %v595 = vmul.f32 %v436, %v276
    %v596 = vmul.f32 %v437, %v277
    %v597 = vmul.f32 %v438, %v278
    %v598 = vmul.f32 %v439, %v279
    %v599 = vmul.f32 %v440, %v280
    %v600 = vmul.f32 %v441, %v281
    %v601 = vmul.f32 %v442, %v282
    %v602 = vmul.f32 %v443, %v283
    %v603 = vmul.f32 %v444, %v284
    %v604 = vmul.f32 %v445, %v285
    %v605 = vmul.f32 %v446, %v286
    %v606 = vmul.f32 %v447, %v287
    %v607 = vmul.f32 %v448, %v288
    %v608 = vmul.f32 %v449, %v289
    %v609 = vmul.f32 %v450, %v290
    %v610 = vmul.f32 %v451, %v291
    %v611 = vmul.f32 %v452, %v292
    %v612 = vmul.f32 %v453, %v293
    %v613 = vmul.f32 %v454, %v294
    %v614 = vmul.f32 %v455, %v295
    %v615 = vmul.f32 %v456, %v296
    %v616 = vmul.f32 %v457, %v297
    %v617 = vmul.f32 %v458, %v298
    %v618 = vmul.f32 %v459, %v299
    %v619 = vmul.f32 %v460, %v300
    %v620 = vmul.f32 %v461, %v301
    %v621 = vmul.f32 %v462, %v302
    %v622 = vmul.f32 %v463, %v303
    %v623 = vmul.f32 %v464, %v304
    %v624 = vmul.f32 %v465, %v305
    %v625 = vmul.f32 %v466, %v306
    %v626 = vmul.f32 %v467, %v307
    %v627 = vmul.f32 %v468, %v308
    %v628 = vmul.f32 %v469, %v309
    %v629 = vmul.f32 %v470, %v310
    %v630 = vmul.f32 %v471, %v311
    %v631 = vmul.f32 %v472, %v312
    %v632 = vmul.f32 %v473, %v313
    %v633 = vmul.f32 %v474, %v314
    %v634 = vmul.f32 %v475, %v315
    %v635 = vmul.f32 %v476, %v316
    %v636 = vmul.f32 %v477, %v317
    %v637 = vmul.f32 %v478, %v318
    %v638 = vadd.f32 %v589, %v590
    %v639 = vadd.f32 %v638, %v591
    %v640 = vadd.f32 %v639, %v592
    %v641 = vadd.f32 %v640, %v593
    %v642 = vadd.f32 %v641, %v594
    %v643 = vadd.f32 %v642, %v595
    %v644 = vadd.f32 %v643, %v596
    %v645 = vadd.f32 %v644, %v597
    %v646 = vadd.f32 %v645, %v598
    %v647 = vadd.f32 %v646, %v599
    %v648 = vadd.f32 %v647, %v600
    %v649 = vadd.f32 %v648, %v601
    %v650 = vadd.f32 %v649, %v602
    %v651 = vadd.f32 %v650, %v603
    %v652 = vadd.f32 %v651, %v604
    %v653 = vadd.f32 %v652, %v605
    %v654 = vadd.f32 %v653, %v606
    %v655 = vadd.f32 %v654, %v607
    %v656 = vadd.f32 %v655, %v608
    %v657 = vadd.f32 %v656, %v609
    %v658 = vadd.f32 %v657, %v610
    %v659 = vadd.f32 %v658, %v611
    %v660 = vadd.f32 %v659, %v612
    %v661 = vadd.f32 %v660, %v613
    %v662 = vadd.f32 %v661, %v614
    %v663 = vadd.f32 %v662, %v615
    %v664 = vadd.f32 %v663, %v616
    %v665 = vadd.f32 %v664, %v617
    %v666 = vadd.f32 %v665, %v618
    %v667 = vadd.f32 %v666, %v619
    %v668 = vadd.f32 %v667, %v620
    %v669 = vadd.f32 %v668, %v621
    %v670 = vadd.f32 %v669, %v622
    %v671 = vadd.f32 %v670, %v623
    %v672 = vadd.f32 %v671, %v624
    %v673 = vadd.f32 %v672, %v625
    %v674 = vadd.f32 %v673, %v626
    %v675 = vadd.f32 %v674, %v627
    %v676 = vadd.f32 %v675, %v628
    %v677 = vadd.f32 %v676, %v629
    %v678 = vadd.f32 %v677, %v630
    %v679 = vadd.f32 %v678, %v631
    %v680 = vadd.f32 %v679, %v632
    %v681 = vadd.f32 %v680, %v633
    %v682 = vadd.f32 %v681, %v634
    %v683 = vadd.f32 %v682, %v635
    %v684 = vadd.f32 %v683, %v636
    %v685 = vadd.f32 %v684, %v637
    %686 = vadd.xlane.f32.xlu0 %v685
    %v687 = vpop.xlane.xlu0 %686
    %v688 = vrot.slane %v687, 4
    %v689 = vadd.f32 %v687, %v688
    %v690 = vrot.slane %v689, 2
    %v691 = vadd.f32 %v689, %v690
    %v692 = vrot.slane %v691, 1
    %v693 = vadd.f32 %v691, %v692
    %s694 = vtos %v693
    %vm695 = vmand %vm585, %vm425
    %v696 = vstv %s694
    %v697 = vsel %vm695, %v696, %v588
    %s698 = sld [smem:[#allocation8]]
    %v699 = vstv %s698
    %s700 = sld [smem:[#allocation8 + $0x1]]
    %v701 = vstv %s700
    %v702 = vsel %vm425, %v701, %v699
    %v703 = vadd.f32 %v697, %v702
    %v704 = vxor.u32 %v703, 2147483648
    %v705 = vmul.f32 %v704, 1.442695
    %v706 = vpow.pop %v705
    %v707 = vadd.f32 %v706, 1.0
    %v708 = vrcp.pop %v707
    %v709 = vmul.f32 1.0, %v708
    %vm710 = vcmask 9216
    %711 = vst.msk [vmem:[#allocation9] sm:$0x3] %vm710, %v709
    // Predicated region
    $region26: #{tpu_custom_call.1} parent=1 // pred_check
      _
    $region27: #{tpu_custom_call.1} parent=1 // pred_check_branch
      %713 = sbr.rel (0) target = $region29
    $region28: #{tpu_custom_call.1} parent=1 // pred_region
      %s715 = ssub.s32 32, 32
      %716 = vsyncadd [#allocation4], %s715
      %s718 = sshll.u32 [#allocation9], 4
      %s719 = int_to_ptr.vmem [resolvable:$true] %s718
      %721 = dma.vmem_to_hbm [thread:$0]  %s719, 32, %s3, [#allocation4]
    $region29: #{tpu_custom_call.1} parent=1 // pred_fallthru
      _
    // Predicated region
    $region30: #{tpu_custom_call.1} parent=1 // pred_check
      _
    $region31: #{tpu_custom_call.1} parent=1 // pred_check_branch
      %723 = sbr.rel (0) target = $region33
    $region32: #{tpu_custom_call.1} parent=1 // pred_region
      %724 = dma.done [#allocation4], 32
    $region33: #{tpu_custom_call.1} parent=1 // pred_fallthru
      _
    %725 = vsyncpa [#allocation3], 1
    %726 = vsyncpa [#allocation7], 1
    %727 = vsyncpa [#allocation4], 1
    %728 = vsyncpa [#allocation5], 1

</llo_original>
